<compile_context>
chip_gen: v7x
topology: tpu7x:2x2x1
jax: 0.10.0
libtpu: 0.0.40
codegen_flags: <defaults>
</compile_context>

<pallas_src>
import jax
import jax.numpy as jnp
from jax.experimental import pallas as pl
from jax.experimental.pallas import tpu as pltpu

INPUT_CH = 4
GEO_FEAT_DIM = 16
HIDDEN_DIM_COLOR = 64
NUM_LAYERS_COLOR = 3
IN_DIM = INPUT_CH + GEO_FEAT_DIM   # 20
OUT_DIM = 3

_MIN_TILE_M = 128
_MAX_TILE_M = 4096


def colornet_kernel(x_ref, w1_ref, w2_ref, w3_ref, o_ref):
    # x arrives as f32 (no wrapper-side cast / extra HBM pass); cast to bf16 on the
    # VPU right before the first dot. Every dot is bf16 x bf16 with f32 accumulation,
    # and the ReLU intermediates are explicitly cast back to bf16 so layers 2/3 also
    # take the fast bf16 MXU path.
    x = x_ref[...].astype(jnp.bfloat16)
    h = jnp.dot(x, w1_ref[...], preferred_element_type=jnp.float32)
    h = jnp.maximum(h, 0.0).astype(jnp.bfloat16)
    h = jnp.dot(h, w2_ref[...], preferred_element_type=jnp.float32)
    h = jnp.maximum(h, 0.0).astype(jnp.bfloat16)
    y = jnp.dot(h, w3_ref[...], preferred_element_type=jnp.float32)
    o_ref[...] = y.astype(o_ref.dtype)


def _choose_tile_m(n):
    """Large tiles amortize the per-grid-step overhead (dominant for this tiny MLP).
    Keep >= 2 steps for large N so the 'parallel' row axis can still shard across
    v7x's two TensorCores; single-TC chips (v5e/v6e) just get fewer, bigger steps."""
    if n <= _MIN_TILE_M:
        return _MIN_TILE_M
    tile = min(_MAX_TILE_M, pl.next_power_of_2(pl.cdiv(n, 2)))
    return max(_MIN_TILE_M, tile)


def colornet_forward(x, w1, w2, w3, *, tile_m=None):
    N, D = x.shape
    assert D == IN_DIM
    out_dtype = x.dtype

    if tile_m is None:
        tile_m = _choose_tile_m(N)

    # Weights are tiny (<25 KB total in bf16): cast once in the wrapper so each grid
    # step DMAs half the bytes and skips per-step VPU casts. x is intentionally NOT
    # cast here (that would add a full extra HBM pass over the dominant stream).
    w1_c = w1.astype(jnp.bfloat16)
    w2_c = w2.astype(jnp.bfloat16)
    w3_c = w3.astype(jnp.bfloat16)

    # Ragged N: rely on Pallas partial-block handling for the last tile. Out-of-bounds
    # rows read unspecified values, but rows are independent and the MLP has no bias,
    # so tail garbage only lands in tail output rows, whose stores Pallas discards.
    grid = (pl.cdiv(N, tile_m),)

    out = pl.pallas_call(
        colornet_kernel,
        out_shape=jax.ShapeDtypeStruct((N, OUT_DIM), out_dtype),
        grid_spec=pl.GridSpec(
            grid=grid,
            in_specs=[
                # x tiled over rows (f32 DMA; cast to bf16 in-kernel).
                pl.BlockSpec((tile_m, IN_DIM), lambda i: (i, 0)),
                # Weights: same block every step -> fully resident.
                pl.BlockSpec((IN_DIM, HIDDEN_DIM_COLOR), lambda i: (0, 0)),
                pl.BlockSpec((HIDDEN_DIM_COLOR, HIDDEN_DIM_COLOR), lambda i: (0, 0)),
                pl.BlockSpec((HIDDEN_DIM_COLOR, OUT_DIM), lambda i: (0, 0)),
            ],
            out_specs=pl.BlockSpec((tile_m, OUT_DIM), lambda i: (i, 0)),
        ),
        compiler_params=pltpu.CompilerParams(
            # "parallel" lets the row axis shard across TensorCores on v7x; on
            # single-TC v5e/v6e it is equivalent to "arbitrary".
            dimension_semantics=("parallel",),
        ),
    )(x, w1_c, w2_c, w3_c)

    return out


def init_params(key):
    """Deterministic init mimicking nn.Linear default (uniform +/- 1/sqrt(fan_in)),
    stored as (in_dim, out_dim) so the kernel computes x @ W."""
    k1, k2, k3 = jax.random.split(key, 3)

    def linear_w(k, in_dim, out_dim):
        bound = 1.0 / jnp.sqrt(in_dim)
        return jax.random.uniform(
            k, (in_dim, out_dim), dtype=jnp.float32, minval=-bound, maxval=bound
        )

    w1 = linear_w(k1, IN_DIM, HIDDEN_DIM_COLOR)
    w2 = linear_w(k2, HIDDEN_DIM_COLOR, HIDDEN_DIM_COLOR)
    w3 = linear_w(k3, HIDDEN_DIM_COLOR, OUT_DIM)
    return w1, w2, w3


def colornet_reference(x, w1, w2, w3):
    """Pure-JAX reference mirroring the kernel's exact dtype scheme:
    bf16 inputs/weights/intermediates, f32 accumulation on every dot."""
    xc = x.astype(jnp.bfloat16)
    w1c = w1.astype(jnp.bfloat16)
    w2c = w2.astype(jnp.bfloat16)
    w3c = w3.astype(jnp.bfloat16)
    h = jnp.dot(xc, w1c, preferred_element_type=jnp.float32)
    h = jnp.maximum(h, 0.0).astype(jnp.bfloat16)
    h = jnp.dot(h, w2c, preferred_element_type=jnp.float32)
    h = jnp.maximum(h, 0.0).astype(jnp.bfloat16)
    y = jnp.dot(h, w3c, preferred_element_type=jnp.float32)
    return y.astype(x.dtype)


if __name__ == "__main__":
    key = jax.random.PRNGKey(0)
    kx, kw = jax.random.split(key)

    # Deliberately ragged N (not a multiple of the tile) to exercise Pallas
    # partial-block handling; real NeRF sample counts are ragged.
    N = 200
    x = jax.random.normal(kx, (N, IN_DIM), dtype=jnp.float32)
    w1, w2, w3 = init_params(kw)

    out = colornet_forward(x, w1, w2, w3)
    out = jax.block_until_ready(out)

    ref = colornet_reference(x, w1, w2, w3)
    assert out.shape == (N, OUT_DIM)
    assert jnp.allclose(out, ref, atol=1e-2, rtol=1e-2), "mismatch vs reference"

    print("KERNEL_OK")
</pallas_src>

<mosaic_0001>
module attributes {stable_mosaic.version = 11 : i64} {
  func.func @colornet_kernel(%arg0: i32, %arg1: memref<128x20xf32, #tpu.memory_space<vmem>>, %arg2: memref<20x64xbf16, #tpu.memory_space<vmem>>, %arg3: memref<64x64xbf16, #tpu.memory_space<vmem>>, %arg4: memref<64x3xbf16, #tpu.memory_space<vmem>>, %arg5: memref<128x3xf32, #tpu.memory_space<vmem>>) attributes {dimension_semantics = [#tpu.dimension_semantics<parallel>], iteration_bounds = array<i64: 2>, scalar_prefetch = 0 : i64, scratch_operands = 0 : i64, tpu.core_type = #tpu.core_type<tc>, window_params = [{transform_indices = @transform_0, window_bounds = array<i64: 128, 20>}, {pipeline_mode = #tpu.pipeline_mode<synchronous>, transform_indices = @transform_1, window_bounds = array<i64: 20, 64>}, {pipeline_mode = #tpu.pipeline_mode<synchronous>, transform_indices = @transform_2, window_bounds = array<i64: 64, 64>}, {pipeline_mode = #tpu.pipeline_mode<synchronous>, transform_indices = @transform_3, window_bounds = array<i64: 64, 3>}, {transform_indices = @transform_4, window_bounds = array<i64: 128, 3>}]} {
    %c0 = arith.constant 0 : index
    %c0_0 = arith.constant 0 : index
    %0 = vector.load %arg1[%c0, %c0_0] : memref<128x20xf32, #tpu.memory_space<vmem>>, vector<128x20xf32>
    %1 = arith.truncf %0 : vector<128x20xf32> to vector<128x20xbf16>
    %c0_1 = arith.constant 0 : index
    %c0_2 = arith.constant 0 : index
    %2 = vector.load %arg2[%c0_1, %c0_2] : memref<20x64xbf16, #tpu.memory_space<vmem>>, vector<20x64xbf16>
    %cst = arith.constant dense<0.000000e+00> : vector<128x64xf32>
    %3 = tpu.matmul %1, %2, %cst {dimension_numbers = #tpu.dot_dimension_numbers<[1], [0], [0], [1], [0, 0, 1, 1], [], []>} : vector<128x20xbf16>, vector<20x64xbf16>, vector<128x64xf32> -> vector<128x64xf32>
    %cst_3 = arith.constant 0.000000e+00 : f32
    %4 = vector.broadcast %cst_3 : f32 to vector<128x64xf32>
    %5 = arith.maximumf %3, %4 : vector<128x64xf32>
    %6 = arith.truncf %5 : vector<128x64xf32> to vector<128x64xbf16>
    %c0_4 = arith.constant 0 : index
    %c0_5 = arith.constant 0 : index
    %7 = vector.load %arg3[%c0_4, %c0_5] : memref<64x64xbf16, #tpu.memory_space<vmem>>, vector<64x64xbf16>
    %cst_6 = arith.constant dense<0.000000e+00> : vector<128x64xf32>
    %8 = tpu.matmul %6, %7, %cst_6 {dimension_numbers = #tpu.dot_dimension_numbers<[1], [0], [0], [1], [0, 0, 1, 1], [], []>} : vector<128x64xbf16>, vector<64x64xbf16>, vector<128x64xf32> -> vector<128x64xf32>
    %cst_7 = arith.constant 0.000000e+00 : f32
    %9 = vector.broadcast %cst_7 : f32 to vector<128x64xf32>
    %10 = arith.maximumf %8, %9 : vector<128x64xf32>
    %11 = arith.truncf %10 : vector<128x64xf32> to vector<128x64xbf16>
    %c0_8 = arith.constant 0 : index
    %c0_9 = arith.constant 0 : index
    %12 = vector.load %arg4[%c0_8, %c0_9] : memref<64x3xbf16, #tpu.memory_space<vmem>>, vector<64x3xbf16>
    %cst_10 = arith.constant dense<0.000000e+00> : vector<128x3xf32>
    %13 = tpu.matmul %11, %12, %cst_10 {dimension_numbers = #tpu.dot_dimension_numbers<[1], [0], [0], [1], [0, 0, 1, 1], [], []>} : vector<128x64xbf16>, vector<64x3xbf16>, vector<128x3xf32> -> vector<128x3xf32>
    %c0_11 = arith.constant 0 : index
    %c0_12 = arith.constant 0 : index
    %14 = vector.load %arg5[%c0_11, %c0_12] : memref<128x3xf32, #tpu.memory_space<vmem>>, vector<128x3xf32>
    tpu.vector_store %arg5[%c0_11, %c0_12], %13 {strides = array<i32>} : memref<128x3xf32, #tpu.memory_space<vmem>>, vector<128x3xf32>,
    return
  }
  func.func @transform_0(%arg0: i32) -> (i32, i32) {
    %c0_i32 = arith.constant 0 : i32
    %c0_i32_0 = arith.constant 0 : i32
    return %arg0, %c0_i32 : i32, i32
  }
  func.func @transform_1(%arg0: i32) -> (i32, i32) {
    %c0_i32 = arith.constant 0 : i32
    %c0_i32_0 = arith.constant 0 : i32
    %c0_i32_1 = arith.constant 0 : i32
    return %c0_i32, %c0_i32_0 : i32, i32
  }
  func.func @transform_2(%arg0: i32) -> (i32, i32) {
    %c0_i32 = arith.constant 0 : i32
    %c0_i32_0 = arith.constant 0 : i32
    %c0_i32_1 = arith.constant 0 : i32
    return %c0_i32, %c0_i32_0 : i32, i32
  }
  func.func @transform_3(%arg0: i32) -> (i32, i32) {
    %c0_i32 = arith.constant 0 : i32
    %c0_i32_0 = arith.constant 0 : i32
    %c0_i32_1 = arith.constant 0 : i32
    return %c0_i32, %c0_i32_0 : i32, i32
  }
  func.func @transform_4(%arg0: i32) -> (i32, i32) {
    %c0_i32 = arith.constant 0 : i32
    %c0_i32_0 = arith.constant 0 : i32
    return %arg0, %c0_i32 : i32, i32
  }
}

</mosaic_0001>

<llo_original>
// kernel: tpu_custom_call.1
$region0: #{tpu_custom_call.1}
  #allocation0 [shape = 'u32[]', space=smem, size = 0x4, offset = 0x4, fixed_abs, tag = 'smem constant byte address 0x4 - core index']
  #allocation1 [shape = 'u32[144,128]{1,0:T(1,128)}', space=vmem, size = 0x12000, scoped, tag = 'internal scratch']
  %s0 = inlined_call_operand.vmem [shape: f32[200,20], index: 0, kind: input, shape index: {}]
  %s1 = inlined_call_operand.vmem [shape: bf16[20,64], index: 1, kind: input, shape index: {}]
  %s2 = inlined_call_operand.vmem [shape: bf16[64,64], index: 2, kind: input, shape index: {}]
  %s3 = inlined_call_operand.vmem [shape: bf16[64,3], index: 3, kind: input, shape index: {}]
  %s4 = inlined_call_operand.vmem [shape: f32[200,3], index: 4, kind: output, shape index: {}]
  %s5 = sld [smem:[#allocation0]]
  $region97: #{tpu_custom_call.1} parent=0
    _
  %s7 = ssub.s32 1, %s5
  %s8 = scalar_select 0, %s7, %s5
  $region1: #{tpu_custom_call.1} parent=0
    #allocation2 [shape = 'u8[131072]{0}', space=vmem, size = 0x20000, scoped, tag = 'output window, operand 0']
    loop: start=0, step=1, limit=4
    $region2: #{tpu_custom_call.1} parent=1 // loop_pre_header
      _
    $region3: #{tpu_custom_call.1} parent=1 // loop_header
      %s10 = sphi 0, %s14
      %p11 = scmp.ge.s32.totalorder %s10, 4
      %s20 = sphi 0, %s22
      %s23 = sphi 0, %s20
      %s24 = sphi 0, %s23
      %s40 = sphi 0, %s24
      %s44 = sphi 0, %s44
      %s46 = sphi 0, %s44
      %s47 = sphi 0, %s46
      %s61 = sphi 0, %s47
      %s65 = sphi 0, %s65
      %s67 = sphi 0, %s65
      %s68 = sphi 0, %s67
      %s82 = sphi 0, %s68
      %s86 = sphi 0, %s86
      %s88 = sphi 0, %s86
      %s89 = sphi 0, %s88
      %s103 = sphi 0, %s89
      %s109 = sphi 0, %s111
      %s112 = sphi 0, %s109
      %s113 = sphi 0, %s112
      %s129 = sphi 0, %s113
    $region4: #{tpu_custom_call.1} parent=1 // loop_header_branch
      %13 = sbr.rel (%p11) target = $region8
    $region5: #{tpu_custom_call.1} parent=1 // loop_body
      %s15 = ssub.s32 %s10, 1
      %s16 = ssub.s32 %s10, 2
      %s17 = sadd.s32 %s10, 1
      %s18 = ssub.s32 %s10, %s17
      %p19 = scmp.eq.s32.totalorder %s18, 0
      %s21 = sadd.s32 %s20, 1
      %s22 = scalar_select %p19, %s20, %s21
      %p25 = pneg %p19
      %p26 = scmp.eq.s32.totalorder %s10, 1
      %p27 = por %p25, %p26
      %p28 = scmp.ne.s32.totalorder %s20, %s23
      %p29 = scmp.eq.s32.totalorder %s10, 0
      %p30 = por %p28, %p29
      %p31 = scmp.ne.s32.totalorder %s20, %s23
      %p32 = scmp.eq.s32.totalorder %s15, 1
      %p33 = por %p31, %p32
      %p34 = scmp.ne.s32.totalorder %s23, %s24
      %p35 = scmp.eq.s32.totalorder %s15, 0
      %p36 = por %p34, %p35
      %p37 = scmp.ne.s32.totalorder %s23, %s24
      %p38 = scmp.eq.s32.totalorder %s16, 1
      %p39 = por %p37, %p38
      %p41 = scmp.ne.s32.totalorder %s24, %s40
      %p42 = scmp.eq.s32.totalorder %s16, 0
      %p43 = por %p41, %p42
      %s45 = sadd.s32 %s44, 1
      %p48 = scmp.eq.s32.totalorder %s10, 1
      %p49 = scmp.ne.s32.totalorder %s44, %s46
      %p50 = scmp.eq.s32.totalorder %s10, 0
      %p51 = por %p49, %p50
      %p52 = scmp.ne.s32.totalorder %s44, %s46
      %p53 = scmp.eq.s32.totalorder %s15, 1
      %p54 = por %p52, %p53
      %p55 = scmp.ne.s32.totalorder %s46, %s47
      %p56 = scmp.eq.s32.totalorder %s15, 0
      %p57 = por %p55, %p56
      %p58 = scmp.ne.s32.totalorder %s46, %s47
      %p59 = scmp.eq.s32.totalorder %s16, 1
      %p60 = por %p58, %p59
      %p62 = scmp.ne.s32.totalorder %s47, %s61
      %p63 = scmp.eq.s32.totalorder %s16, 0
      %p64 = por %p62, %p63
      %s66 = sadd.s32 %s65, 1
      %p69 = scmp.eq.s32.totalorder %s10, 1
      %p70 = scmp.ne.s32.totalorder %s65, %s67
      %p71 = scmp.eq.s32.totalorder %s10, 0
      %p72 = por %p70, %p71
      %p73 = scmp.ne.s32.totalorder %s65, %s67
      %p74 = scmp.eq.s32.totalorder %s15, 1
      %p75 = por %p73, %p74
      %p76 = scmp.ne.s32.totalorder %s67, %s68
      %p77 = scmp.eq.s32.totalorder %s15, 0
      %p78 = por %p76, %p77
      %p79 = scmp.ne.s32.totalorder %s67, %s68
      %p80 = scmp.eq.s32.totalorder %s16, 1
      %p81 = por %p79, %p80
      %p83 = scmp.ne.s32.totalorder %s68, %s82
      %p84 = scmp.eq.s32.totalorder %s16, 0
      %p85 = por %p83, %p84
      %s87 = sadd.s32 %s86, 1
      %p90 = scmp.eq.s32.totalorder %s10, 1
      %p91 = scmp.ne.s32.totalorder %s86, %s88
      %p92 = scmp.eq.s32.totalorder %s10, 0
      %p93 = por %p91, %p92
      %p94 = scmp.ne.s32.totalorder %s86, %s88
      %p95 = scmp.eq.s32.totalorder %s15, 1
      %p96 = por %p94, %p95
      %p97 = scmp.ne.s32.totalorder %s88, %s89
      %p98 = scmp.eq.s32.totalorder %s15, 0
      %p99 = por %p97, %p98
      %p100 = scmp.ne.s32.totalorder %s88, %s89
      %p101 = scmp.eq.s32.totalorder %s16, 1
      %p102 = por %p100, %p101
      %p104 = scmp.ne.s32.totalorder %s89, %s103
      %p105 = scmp.eq.s32.totalorder %s16, 0
      %p106 = por %p104, %p105
      %s107 = ssub.s32 %s10, %s17
      %p108 = scmp.eq.s32.totalorder %s107, 0
      %s110 = sadd.s32 %s109, 1
      %s111 = scalar_select %p108, %s109, %s110
      %p114 = pneg %p108
      %p115 = scmp.eq.s32.totalorder %s10, 1
      %p116 = por %p114, %p115
      %p117 = scmp.ne.s32.totalorder %s109, %s112
      %p118 = scmp.eq.s32.totalorder %s10, 0
      %p119 = por %p117, %p118
      %p120 = scmp.ne.s32.totalorder %s109, %s112
      %p121 = scmp.eq.s32.totalorder %s15, 1
      %p122 = por %p120, %p121
      %p123 = scmp.ne.s32.totalorder %s112, %s113
      %p124 = scmp.eq.s32.totalorder %s15, 0
      %p125 = por %p123, %p124
      %p126 = scmp.ne.s32.totalorder %s112, %s113
      %p127 = scmp.eq.s32.totalorder %s16, 1
      %p128 = por %p126, %p127
      %p130 = scmp.ne.s32.totalorder %s113, %s129
      %p131 = scmp.eq.s32.totalorder %s16, 0
      %p132 = por %p130, %p131
      %p133 = scmp.le.s32.totalorder 1, %s10
      %p134 = scmp.lt.s32.totalorder %s10, 3
      %p135 = pnand %p133, %p134
      %p136 = pneg %p135
      // Predicated region
      $region9: #{tpu_custom_call.1} parent=5 // pred_check
        _
      $region10: #{tpu_custom_call.1} parent=5 // pred_check_branch
        %138 = sbr.rel (%p135) target = $region12
      $region11: #{tpu_custom_call.1} parent=5 // pred_region
        %s139 = ssub.s32 %s10, 1
        // Predicated region
        $region13: #{tpu_custom_call.1} parent=11 // pred_check
          %p140 = pneg %p57
        $region14: #{tpu_custom_call.1} parent=11 // pred_check_branch
          %142 = sbr.rel (%p140) target = $region16
        $region15: #{tpu_custom_call.1} parent=11 // pred_region
          _
        $region16: #{tpu_custom_call.1} parent=11 // pred_fallthru
          _
        // Predicated region
        $region17: #{tpu_custom_call.1} parent=11 // pred_check
          %p143 = pneg %p78
        $region18: #{tpu_custom_call.1} parent=11 // pred_check_branch
          %145 = sbr.rel (%p143) target = $region20
        $region19: #{tpu_custom_call.1} parent=11 // pred_region
          _
        $region20: #{tpu_custom_call.1} parent=11 // pred_fallthru
          _
        // Predicated region
        $region21: #{tpu_custom_call.1} parent=11 // pred_check
          %p146 = pneg %p99
        $region22: #{tpu_custom_call.1} parent=11 // pred_check_branch
          %148 = sbr.rel (%p146) target = $region24
        $region23: #{tpu_custom_call.1} parent=11 // pred_region
          _
        $region24: #{tpu_custom_call.1} parent=11 // pred_fallthru
          _
      $region12: #{tpu_custom_call.1} parent=5 // pred_fallthru
        _
      %p149 = scmp.lt.s32.totalorder %s10, 2
      // Predicated region
      $region25: #{tpu_custom_call.1} parent=5 // pred_check
        %p150 = pneg %p149
      $region26: #{tpu_custom_call.1} parent=5 // pred_check_branch
        %152 = sbr.rel (%p150) target = $region28
      $region27: #{tpu_custom_call.1} parent=5 // pred_region
        // Predicated region
        $region29: #{tpu_custom_call.1} parent=27 // pred_check
          %p153 = pneg %p30
        $region30: #{tpu_custom_call.1} parent=27 // pred_check_branch
          %155 = sbr.rel (%p153) target = $region32
        $region31: #{tpu_custom_call.1} parent=27 // pred_region
          %s156 = smul.u32 16, %s10
          %s157 = ssub.s32 25, %s156
          %p158 = scmp.lt.s32.totalorder %s157, 16
          %s159 = scalar_select %p158, %s157, 16
          %s160 = smul.u32 128, %s159
          %p161 = scmp.lt.s32.totalorder %s156, 24
          %s162 = scalar_select %p161, %s156, 24
          %s163 = smul.addr %s162, 8
          %s164 = scalar_lea.vmem %s0, %s163
          %s165 = smul.u32 16, %s10
          %s166 = ssub.s32 25, %s165
          %p167 = scmp.lt.s32.totalorder %s166, 16
          %s168 = scalar_select %p167, %s166, 16
          %s169 = smul.u32 128, %s168
        $region32: #{tpu_custom_call.1} parent=27 // pred_fallthru
          _
      $region28: #{tpu_custom_call.1} parent=5 // pred_fallthru
        _
      %p170 = scmp.le.s32.totalorder 1, %s10
      %p171 = scmp.lt.s32.totalorder %s10, 3
      %p172 = pnand %p170, %p171
      %p173 = pneg %p172
      // Predicated region
      $region33: #{tpu_custom_call.1} parent=5 // pred_check
        _
      $region34: #{tpu_custom_call.1} parent=5 // pred_check_branch
        %175 = sbr.rel (%p172) target = $region36
      $region35: #{tpu_custom_call.1} parent=5 // pred_region
        %s176 = ssub.s32 %s10, 1
        %s177 = smul.u32 16, %s15
        %s178 = ssub.s32 25, %s177
        %p179 = scmp.lt.s32.totalorder %s178, 16
        %s180 = scalar_select %p179, %s178, 16
        %s181 = smul.u32 128, %s180
        %p182 = scmp.lt.s32.totalorder %s177, 24
        %s183 = scalar_select %p182, %s177, 24
        %s184 = smul.addr %s183, 8
        %s185 = scalar_lea.vmem %s0, %s184
        %p186 = pneg %p36
        %p187 = pneg %p33
        %p188 = pneg %p57
        %p189 = pneg %p54
        %p190 = pneg %p78
        %p191 = pneg %p75
        %p192 = pneg %p99
        %p193 = pneg %p96
        %p194 = pneg %p125
        %p195 = pneg %p122
        %s196 = sand.u32 %s112, 1
        %s197 = sand.u32 %s112, 1
        %s198 = smul.addr %s197, 128
        %s199 = scalar_lea.vmem [#allocation2], %s198
        %s200 = smul.u32 16, %s15
        %s201 = ssub.s32 25, %s200
        %p202 = scmp.lt.s32.totalorder %s201, 16
        %s203 = scalar_select %p202, %s201, 16
        %s204 = smul.u32 128, %s203
        %p205 = scmp.lt.s32.totalorder %s200, 24
        %s206 = scalar_select %p205, %s200, 24
        %s207 = smul.addr %s206, 8
        %s208 = scalar_lea.vmem %s0, %s207
        %s209 = smul.u32 16, %s15
        %s210 = ssub.s32 25, %s209
        %p211 = scmp.lt.s32.totalorder %s210, 16
        %s212 = scalar_select %p211, %s210, 16
        %s213 = smul.u32 128, %s212
        %s214 = smul.u32 16, %s15
        %s215 = ssub.s32 25, %s214
        %p216 = scmp.lt.s32.totalorder %s215, 16
        %s217 = scalar_select %p216, %s215, 16
        %s218 = smul.u32 128, %s217
        %v220 = vld [vmem:[%s208] sm:$0xff]
        %v221 = vld [vmem:[%s208 + $0x8] sm:$0xff]
        %v222 = vld [vmem:[%s208 + $0x10] sm:$0xff]
        %v223 = vld [vmem:[%s208 + $0x18] sm:$0xff]
        %v224 = vld [vmem:[%s208 + $0x20] sm:$0xff]
        %v225 = vld [vmem:[%s208 + $0x28] sm:$0xff]
        %v226 = vld [vmem:[%s208 + $0x30] sm:$0xff]
        %v227 = vld [vmem:[%s208 + $0x38] sm:$0xff]
        %v228 = vld [vmem:[%s208 + $0x40] sm:$0xff]
        %v229 = vld [vmem:[%s208 + $0x48] sm:$0xff]
        %v230 = vld [vmem:[%s208 + $0x50] sm:$0xff]
        %v231 = vld [vmem:[%s208 + $0x58] sm:$0xff]
        %v232 = vld [vmem:[%s208 + $0x60] sm:$0xff]
        %v233 = vld [vmem:[%s208 + $0x68] sm:$0xff]
        %v234 = vld [vmem:[%s208 + $0x70] sm:$0xff]
        %v235 = vld [vmem:[%s208 + $0x78] sm:$0xff]
        %v236 = vpack.c.bf16 %v221, %v220
        %v237 = vpack.c.bf16 %v223, %v222
        %v238 = vpack.c.bf16 %v225, %v224
        %v239 = vpack.c.bf16 %v227, %v226
        %v240 = vpack.c.bf16 %v229, %v228
        %v241 = vpack.c.bf16 %v231, %v230
        %v242 = vpack.c.bf16 %v233, %v232
        %v243 = vpack.c.bf16 %v235, %v234
        %v244 = vld [vmem:[%s1] sm:$0xf]
        %v245 = vld [vmem:[%s1 + $0x4] sm:$0xf]
        %v246 = vld [vmem:[%s1 + $0x8] sm:$0x3]
        %v250 = vunpack.c.l.b16 %v244
        %v251 = vunpack.c.l.b16 %v245
        %v252 = vunpack.c.l.b16 %v246
        %v253 = vpack.c.b16 %v251, %v250
        %v254 = vpack.c.b16 %v252, %v252
        %vm256 = vcmask 162816
        %v258 = vsel %vm256, %v236, 0
        %v261 = vsel %vm256, %v237, 0
        %v264 = vsel %vm256, %v238, 0
        %v267 = vsel %vm256, %v239, 0
        %v270 = vsel %vm256, %v240, 0
        %v273 = vsel %vm256, %v241, 0
        %v276 = vsel %vm256, %v242, 0
        %v279 = vsel %vm256, %v243, 0
        %vm281 = vcmask 1041408
        %v283 = vsel %vm281, %v254, 0
        %285 = vmatprep.subr.bf16.mxu0 0
        %286 = vmatpush1.bf16.msra.mxu0 %v253
        %287 = vmatprep.subr.bf16.mxu0 0
        %288 = vmatpush1.bf16.msra.mxu0 %v283
        %289 = vmatprep.subr.bf16.mxu0 0
        %290 = vmatpush1.bf16.msra.mxu0 0
        %291 = vmatprep.subr.bf16.mxu0 0
        %292 = vmatpush1.bf16.msra.mxu0 0
        %293 = vmatprep.subr.bf16.mxu0 0
        %294 = vmatpush1.bf16.msra.mxu0 0
        %295 = vmatprep.subr.bf16.mxu0 0
        %296 = vmatpush1.bf16.msra.mxu0 0
        %297 = vmatprep.subr.bf16.mxu0 0
        %298 = vmatpush1.bf16.msra.mxu0 0
        %299 = vmatprep.subr.bf16.mxu0 0
        %300 = vmatpush1.bf16.msra.mxu0 0
        %301 = vmatprep.subr.bf16.mxu0 0
        %302 = vmatpush1.bf16.msra.mxu0 0
        %303 = vmatprep.subr.bf16.mxu0 0
        %304 = vmatpush1.bf16.msra.mxu0 0
        %305 = vmatprep.subr.bf16.mxu0 0
        %306 = vmatpush1.bf16.msra.mxu0 0
        %307 = vmatprep.subr.bf16.mxu0 0
        %308 = vmatpush1.bf16.msra.mxu0 0
        %309 = vmatprep.subr.bf16.mxu0 0
        %310 = vmatpush1.bf16.msra.mxu0 0
        %311 = vmatprep.subr.bf16.mxu0 0
        %312 = vmatpush1.bf16.msra.mxu0 0
        %313 = vmatprep.subr.bf16.mxu0 0
        %314 = vmatpush1.bf16.msra.mxu0 0
        %315 = vmatprep.subr.bf16.mxu0 0
        %316 = vmatpush1.bf16.msra.mxu0 0
        %317 = vmatprep.mubr.bf16.mxu0 0
        %318 = vmatmul.mubr.bf16.gmra.mrb[0].mxu0 %v258
        %v319 = vpop.f32.mrb[0].mxu0
        %v320 = vadd.f32 0.0, %v319
        %v321 = vpop.f32.mrb[0].mxu0
        %v322 = vpop.f32.mrb[0].mxu0
        %v323 = vadd.f32 0.0, %v322
        %v324 = vpop.f32.mrb[0].mxu0
        %325 = vmatprep.mubr.bf16.mxu0 0
        %326 = vmatmul.mubr.bf16.gmra.mrb[0].mxu0 %v261
        %v327 = vpop.f32.mrb[0].mxu0
        %v328 = vadd.f32 0.0, %v327
        %v329 = vpop.f32.mrb[0].mxu0
        %v330 = vpop.f32.mrb[0].mxu0
        %v331 = vadd.f32 0.0, %v330
        %v332 = vpop.f32.mrb[0].mxu0
        %333 = vmatprep.mubr.bf16.mxu0 0
        %334 = vmatmul.mubr.bf16.gmra.mrb[0].mxu0 %v264
        %v335 = vpop.f32.mrb[0].mxu0
        %v336 = vadd.f32 0.0, %v335
        %v337 = vpop.f32.mrb[0].mxu0
        %v338 = vpop.f32.mrb[0].mxu0
        %v339 = vadd.f32 0.0, %v338
        %v340 = vpop.f32.mrb[0].mxu0
        %341 = vmatprep.mubr.bf16.mxu0 0
        %342 = vmatmul.mubr.bf16.gmra.mrb[0].mxu0 %v267
        %v343 = vpop.f32.mrb[0].mxu0
        %v344 = vadd.f32 0.0, %v343
        %v345 = vpop.f32.mrb[0].mxu0
        %v346 = vpop.f32.mrb[0].mxu0
        %v347 = vadd.f32 0.0, %v346
        %v348 = vpop.f32.mrb[0].mxu0
        %349 = vmatprep.mubr.bf16.mxu0 0
        %350 = vmatmul.mubr.bf16.gmra.mrb[0].mxu0 %v270
        %v351 = vpop.f32.mrb[0].mxu0
        %v352 = vadd.f32 0.0, %v351
        %v353 = vpop.f32.mrb[0].mxu0
        %v354 = vpop.f32.mrb[0].mxu0
        %v355 = vadd.f32 0.0, %v354
        %v356 = vpop.f32.mrb[0].mxu0
        %357 = vmatprep.mubr.bf16.mxu0 0
        %358 = vmatmul.mubr.bf16.gmra.mrb[0].mxu0 %v273
        %v359 = vpop.f32.mrb[0].mxu0
        %v360 = vadd.f32 0.0, %v359
        %v361 = vpop.f32.mrb[0].mxu0
        %v362 = vpop.f32.mrb[0].mxu0
        %v363 = vadd.f32 0.0, %v362
        %v364 = vpop.f32.mrb[0].mxu0
        %365 = vmatprep.mubr.bf16.mxu0 0
        %366 = vmatmul.mubr.bf16.gmra.mrb[0].mxu0 %v276
        %v367 = vpop.f32.mrb[0].mxu0
        %v368 = vadd.f32 0.0, %v367
        %v369 = vpop.f32.mrb[0].mxu0
        %v370 = vpop.f32.mrb[0].mxu0
        %v371 = vadd.f32 0.0, %v370
        %v372 = vpop.f32.mrb[0].mxu0
        %373 = vmatprep.mubr.bf16.mxu0 0
        %374 = vmatmul.mubr.bf16.gmra.mrb[0].mxu0 %v279
        %v375 = vpop.f32.mrb[0].mxu0
        %v376 = vadd.f32 0.0, %v375
        %v377 = vpop.f32.mrb[0].mxu0
        %v378 = vpop.f32.mrb[0].mxu0
        %v379 = vadd.f32 0.0, %v378
        %v380 = vpop.f32.mrb[0].mxu0
        %381 = vdwg.mxu0
        %v382 = vmax.f32 %v320, 0.0
        %v383 = vmax.f32 %v323, 0.0
        %v384 = vmax.f32 %v328, 0.0
        %v385 = vmax.f32 %v331, 0.0
        %v386 = vmax.f32 %v336, 0.0
        %v387 = vmax.f32 %v339, 0.0
        %v388 = vmax.f32 %v344, 0.0
        %v389 = vmax.f32 %v347, 0.0
        %v390 = vmax.f32 %v352, 0.0
        %v391 = vmax.f32 %v355, 0.0
        %v392 = vmax.f32 %v360, 0.0
        %v393 = vmax.f32 %v363, 0.0
        %v394 = vmax.f32 %v368, 0.0
        %v395 = vmax.f32 %v371, 0.0
        %v396 = vmax.f32 %v376, 0.0
        %v397 = vmax.f32 %v379, 0.0
        %v398 = vpack.c.bf16 %v383, %v382
        %v399 = vpack.c.bf16 %v385, %v384
        %v400 = vpack.c.bf16 %v387, %v386
        %v401 = vpack.c.bf16 %v389, %v388
        %v402 = vpack.c.bf16 %v391, %v390
        %v403 = vpack.c.bf16 %v393, %v392
        %v404 = vpack.c.bf16 %v395, %v394
        %v405 = vpack.c.bf16 %v397, %v396
        %v406 = vld [vmem:[%s2] sm:$0xf]
        %v407 = vld [vmem:[%s2 + $0x4] sm:$0xf]
        %v408 = vld [vmem:[%s2 + $0x8] sm:$0xf]
        %v409 = vld [vmem:[%s2 + $0xc] sm:$0xf]
        %v410 = vld [vmem:[%s2 + $0x10] sm:$0xf]
        %v411 = vld [vmem:[%s2 + $0x14] sm:$0xf]
        %v412 = vld [vmem:[%s2 + $0x18] sm:$0xf]
        %v413 = vld [vmem:[%s2 + $0x1c] sm:$0xf]
        %v422 = vunpack.c.l.b16 %v406
        %v423 = vunpack.c.l.b16 %v407
        %v424 = vunpack.c.l.b16 %v408
        %v425 = vunpack.c.l.b16 %v409
        %v426 = vunpack.c.l.b16 %v410
        %v427 = vunpack.c.l.b16 %v411
        %v428 = vunpack.c.l.b16 %v412
        %v429 = vunpack.c.l.b16 %v413
        %v430 = vpack.c.b16 %v423, %v422
        %v431 = vpack.c.b16 %v425, %v424
        %v432 = vpack.c.b16 %v427, %v426
        %v433 = vpack.c.b16 %v429, %v428
        %vm438 = vcmask 523264
        %v440 = vsel %vm438, %v398, 0
        %v443 = vsel %vm438, %v399, 0
        %v446 = vsel %vm438, %v400, 0
        %v449 = vsel %vm438, %v401, 0
        %v452 = vsel %vm438, %v402, 0
        %v455 = vsel %vm438, %v403, 0
        %v458 = vsel %vm438, %v404, 0
        %v461 = vsel %vm438, %v405, 0
        %463 = vmatprep.subr.bf16.mxu0 0
        %464 = vmatpush1.bf16.msra.mxu0 %v430
        %465 = vmatprep.subr.bf16.mxu0 0
        %466 = vmatpush1.bf16.msra.mxu0 %v431
        %467 = vmatprep.subr.bf16.mxu0 0
        %468 = vmatpush1.bf16.msra.mxu0 %v432
        %469 = vmatprep.subr.bf16.mxu0 0
        %470 = vmatpush1.bf16.msra.mxu0 %v433
        %471 = vmatprep.subr.bf16.mxu0 0
        %472 = vmatpush1.bf16.msra.mxu0 0
        %473 = vmatprep.subr.bf16.mxu0 0
        %474 = vmatpush1.bf16.msra.mxu0 0
        %475 = vmatprep.subr.bf16.mxu0 0
        %476 = vmatpush1.bf16.msra.mxu0 0
        %477 = vmatprep.subr.bf16.mxu0 0
        %478 = vmatpush1.bf16.msra.mxu0 0
        %479 = vmatprep.subr.bf16.mxu0 0
        %480 = vmatpush1.bf16.msra.mxu0 0
        %481 = vmatprep.subr.bf16.mxu0 0
        %482 = vmatpush1.bf16.msra.mxu0 0
        %483 = vmatprep.subr.bf16.mxu0 0
        %484 = vmatpush1.bf16.msra.mxu0 0
        %485 = vmatprep.subr.bf16.mxu0 0
        %486 = vmatpush1.bf16.msra.mxu0 0
        %487 = vmatprep.subr.bf16.mxu0 0
        %488 = vmatpush1.bf16.msra.mxu0 0
        %489 = vmatprep.subr.bf16.mxu0 0
        %490 = vmatpush1.bf16.msra.mxu0 0
        %491 = vmatprep.subr.bf16.mxu0 0
        %492 = vmatpush1.bf16.msra.mxu0 0
        %493 = vmatprep.subr.bf16.mxu0 0
        %494 = vmatpush1.bf16.msra.mxu0 0
        %495 = vmatprep.mubr.bf16.mxu0 0
        %496 = vmatmul.mubr.bf16.gmra.mrb[0].mxu0 %v440
        %v497 = vpop.f32.mrb[0].mxu0
        %v498 = vadd.f32 0.0, %v497
        %v499 = vpop.f32.mrb[0].mxu0
        %v500 = vpop.f32.mrb[0].mxu0
        %v501 = vadd.f32 0.0, %v500
        %v502 = vpop.f32.mrb[0].mxu0
        %503 = vmatprep.mubr.bf16.mxu0 0
        %504 = vmatmul.mubr.bf16.gmra.mrb[0].mxu0 %v443
        %v505 = vpop.f32.mrb[0].mxu0
        %v506 = vadd.f32 0.0, %v505
        %v507 = vpop.f32.mrb[0].mxu0
        %v508 = vpop.f32.mrb[0].mxu0
        %v509 = vadd.f32 0.0, %v508
        %v510 = vpop.f32.mrb[0].mxu0
        %511 = vmatprep.mubr.bf16.mxu0 0
        %512 = vmatmul.mubr.bf16.gmra.mrb[0].mxu0 %v446
        %v513 = vpop.f32.mrb[0].mxu0
        %v514 = vadd.f32 0.0, %v513
        %v515 = vpop.f32.mrb[0].mxu0
        %v516 = vpop.f32.mrb[0].mxu0
        %v517 = vadd.f32 0.0, %v516
        %v518 = vpop.f32.mrb[0].mxu0
        %519 = vmatprep.mubr.bf16.mxu0 0
        %520 = vmatmul.mubr.bf16.gmra.mrb[0].mxu0 %v449
        %v521 = vpop.f32.mrb[0].mxu0
        %v522 = vadd.f32 0.0, %v521
        %v523 = vpop.f32.mrb[0].mxu0
        %v524 = vpop.f32.mrb[0].mxu0
        %v525 = vadd.f32 0.0, %v524
        %v526 = vpop.f32.mrb[0].mxu0
        %527 = vmatprep.mubr.bf16.mxu0 0
        %528 = vmatmul.mubr.bf16.gmra.mrb[0].mxu0 %v452
        %v529 = vpop.f32.mrb[0].mxu0
        %v530 = vadd.f32 0.0, %v529
        %v531 = vpop.f32.mrb[0].mxu0
        %v532 = vpop.f32.mrb[0].mxu0
        %v533 = vadd.f32 0.0, %v532
        %v534 = vpop.f32.mrb[0].mxu0
        %535 = vmatprep.mubr.bf16.mxu0 0
        %536 = vmatmul.mubr.bf16.gmra.mrb[0].mxu0 %v455
        %v537 = vpop.f32.mrb[0].mxu0
        %v538 = vadd.f32 0.0, %v537
        %v539 = vpop.f32.mrb[0].mxu0
        %v540 = vpop.f32.mrb[0].mxu0
        %v541 = vadd.f32 0.0, %v540
        %v542 = vpop.f32.mrb[0].mxu0
        %543 = vmatprep.mubr.bf16.mxu0 0
        %544 = vmatmul.mubr.bf16.gmra.mrb[0].mxu0 %v458
        %v545 = vpop.f32.mrb[0].mxu0
        %v546 = vadd.f32 0.0, %v545
        %v547 = vpop.f32.mrb[0].mxu0
        %v548 = vpop.f32.mrb[0].mxu0
        %v549 = vadd.f32 0.0, %v548
        %v550 = vpop.f32.mrb[0].mxu0
        %551 = vmatprep.mubr.bf16.mxu0 0
        %552 = vmatmul.mubr.bf16.gmra.mrb[0].mxu0 %v461
        %v553 = vpop.f32.mrb[0].mxu0
        %v554 = vadd.f32 0.0, %v553
        %v555 = vpop.f32.mrb[0].mxu0
        %v556 = vpop.f32.mrb[0].mxu0
        %v557 = vadd.f32 0.0, %v556
        %v558 = vpop.f32.mrb[0].mxu0
        %559 = vdwg.mxu0
        %v560 = vmax.f32 %v498, 0.0
        %v561 = vmax.f32 %v501, 0.0
        %v562 = vmax.f32 %v506, 0.0
        %v563 = vmax.f32 %v509, 0.0
        %v564 = vmax.f32 %v514, 0.0
        %v565 = vmax.f32 %v517, 0.0
        %v566 = vmax.f32 %v522, 0.0
        %v567 = vmax.f32 %v525, 0.0
        %v568 = vmax.f32 %v530, 0.0
        %v569 = vmax.f32 %v533, 0.0
        %v570 = vmax.f32 %v538, 0.0
        %v571 = vmax.f32 %v541, 0.0
        %v572 = vmax.f32 %v546, 0.0
        %v573 = vmax.f32 %v549, 0.0
        %v574 = vmax.f32 %v554, 0.0
        %v575 = vmax.f32 %v557, 0.0
        %v576 = vpack.c.bf16 %v561, %v560
        %v577 = vpack.c.bf16 %v563, %v562
        %v578 = vpack.c.bf16 %v565, %v564
        %v579 = vpack.c.bf16 %v567, %v566
        %v580 = vpack.c.bf16 %v569, %v568
        %v581 = vpack.c.bf16 %v571, %v570
        %v582 = vpack.c.bf16 %v573, %v572
        %v583 = vpack.c.bf16 %v575, %v574
        %v584 = vld [vmem:[%s3] sm:$0xf]
        %v585 = vld [vmem:[%s3 + $0x4] sm:$0xf]
        %v586 = vld [vmem:[%s3 + $0x8] sm:$0xf]
        %v587 = vld [vmem:[%s3 + $0xc] sm:$0xf]
        %v588 = vld [vmem:[%s3 + $0x10] sm:$0xf]
        %v589 = vld [vmem:[%s3 + $0x14] sm:$0xf]
        %v590 = vld [vmem:[%s3 + $0x18] sm:$0xf]
        %v591 = vld [vmem:[%s3 + $0x1c] sm:$0xf]
        %v600 = vunpack.c.l.b16 %v584
        %v601 = vunpack.c.l.b16 %v585
        %v602 = vunpack.c.l.b16 %v586
        %v603 = vunpack.c.l.b16 %v587
        %v604 = vunpack.c.l.b16 %v588
        %v605 = vunpack.c.l.b16 %v589
        %v606 = vunpack.c.l.b16 %v590
        %v607 = vunpack.c.l.b16 %v591
        %v608 = vpack.c.b16 %v601, %v600
        %v609 = vpack.c.b16 %v603, %v602
        %v610 = vpack.c.b16 %v605, %v604
        %v611 = vpack.c.b16 %v607, %v606
        %v617 = vsel %vm438, %v576, 0
        %v620 = vsel %vm438, %v577, 0
        %v623 = vsel %vm438, %v578, 0
        %v626 = vsel %vm438, %v579, 0
        %v629 = vsel %vm438, %v580, 0
        %v632 = vsel %vm438, %v581, 0
        %v635 = vsel %vm438, %v582, 0
        %v638 = vsel %vm438, %v583, 0
        %640 = vmatprep.subr.bf16.mxu0 0
        %641 = vmatpush1.bf16.msra.mxu0 %v608
        %642 = vmatprep.subr.bf16.mxu0 0
        %643 = vmatpush1.bf16.msra.mxu0 %v609
        %644 = vmatprep.subr.bf16.mxu0 0
        %645 = vmatpush1.bf16.msra.mxu0 %v610
        %646 = vmatprep.subr.bf16.mxu0 0
        %647 = vmatpush1.bf16.msra.mxu0 %v611
        %648 = vmatprep.subr.bf16.mxu0 0
        %649 = vmatpush1.bf16.msra.mxu0 0
        %650 = vmatprep.subr.bf16.mxu0 0
        %651 = vmatpush1.bf16.msra.mxu0 0
        %652 = vmatprep.subr.bf16.mxu0 0
        %653 = vmatpush1.bf16.msra.mxu0 0
        %654 = vmatprep.subr.bf16.mxu0 0
        %655 = vmatpush1.bf16.msra.mxu0 0
        %656 = vmatprep.subr.bf16.mxu0 0
        %657 = vmatpush1.bf16.msra.mxu0 0
        %658 = vmatprep.subr.bf16.mxu0 0
        %659 = vmatpush1.bf16.msra.mxu0 0
        %660 = vmatprep.subr.bf16.mxu0 0
        %661 = vmatpush1.bf16.msra.mxu0 0
        %662 = vmatprep.subr.bf16.mxu0 0
        %663 = vmatpush1.bf16.msra.mxu0 0
        %664 = vmatprep.subr.bf16.mxu0 0
        %665 = vmatpush1.bf16.msra.mxu0 0
        %666 = vmatprep.subr.bf16.mxu0 0
        %667 = vmatpush1.bf16.msra.mxu0 0
        %668 = vmatprep.subr.bf16.mxu0 0
        %669 = vmatpush1.bf16.msra.mxu0 0
        %670 = vmatprep.subr.bf16.mxu0 0
        %671 = vmatpush1.bf16.msra.mxu0 0
        %672 = vmatprep.mubr.bf16.mxu0 0
        %673 = vmatmul.mubr.bf16.gmra.mrb[0].mxu0 %v617
        %v674 = vpop.f32.mrb[0].mxu0
        %v675 = vadd.f32 0.0, %v674
        %v676 = vpop.f32.mrb[0].mxu0
        %v677 = vpop.f32.mrb[0].mxu0
        %v678 = vadd.f32 0.0, %v677
        %v679 = vpop.f32.mrb[0].mxu0
        %680 = vmatprep.mubr.bf16.mxu0 0
        %681 = vmatmul.mubr.bf16.gmra.mrb[0].mxu0 %v620
        %v682 = vpop.f32.mrb[0].mxu0
        %v683 = vadd.f32 0.0, %v682
        %v684 = vpop.f32.mrb[0].mxu0
        %v685 = vpop.f32.mrb[0].mxu0
        %v686 = vadd.f32 0.0, %v685
        %v687 = vpop.f32.mrb[0].mxu0
        %688 = vmatprep.mubr.bf16.mxu0 0
        %689 = vmatmul.mubr.bf16.gmra.mrb[0].mxu0 %v623
        %v690 = vpop.f32.mrb[0].mxu0
        %v691 = vadd.f32 0.0, %v690
        %v692 = vpop.f32.mrb[0].mxu0
        %v693 = vpop.f32.mrb[0].mxu0
        %v694 = vadd.f32 0.0, %v693
        %v695 = vpop.f32.mrb[0].mxu0
        %696 = vmatprep.mubr.bf16.mxu0 0
        %697 = vmatmul.mubr.bf16.gmra.mrb[0].mxu0 %v626
        %v698 = vpop.f32.mrb[0].mxu0
        %v699 = vadd.f32 0.0, %v698
        %v700 = vpop.f32.mrb[0].mxu0
        %v701 = vpop.f32.mrb[0].mxu0
        %v702 = vadd.f32 0.0, %v701
        %v703 = vpop.f32.mrb[0].mxu0
        %704 = vmatprep.mubr.bf16.mxu0 0
        %705 = vmatmul.mubr.bf16.gmra.mrb[0].mxu0 %v629
        %v706 = vpop.f32.mrb[0].mxu0
        %v707 = vadd.f32 0.0, %v706
        %v708 = vpop.f32.mrb[0].mxu0
        %v709 = vpop.f32.mrb[0].mxu0
        %v710 = vadd.f32 0.0, %v709
        %v711 = vpop.f32.mrb[0].mxu0
        %712 = vmatprep.mubr.bf16.mxu0 0
        %713 = vmatmul.mubr.bf16.gmra.mrb[0].mxu0 %v632
        %v714 = vpop.f32.mrb[0].mxu0
        %v715 = vadd.f32 0.0, %v714
        %v716 = vpop.f32.mrb[0].mxu0
        %v717 = vpop.f32.mrb[0].mxu0
        %v718 = vadd.f32 0.0, %v717
        %v719 = vpop.f32.mrb[0].mxu0
        %720 = vmatprep.mubr.bf16.mxu0 0
        %721 = vmatmul.mubr.bf16.gmra.mrb[0].mxu0 %v635
        %v722 = vpop.f32.mrb[0].mxu0
        %v723 = vadd.f32 0.0, %v722
        %v724 = vpop.f32.mrb[0].mxu0
        %v725 = vpop.f32.mrb[0].mxu0
        %v726 = vadd.f32 0.0, %v725
        %v727 = vpop.f32.mrb[0].mxu0
        %728 = vmatprep.mubr.bf16.mxu0 0
        %729 = vmatmul.mubr.bf16.gmra.mrb[0].mxu0 %v638
        %v730 = vpop.f32.mrb[0].mxu0
        %v731 = vadd.f32 0.0, %v730
        %v732 = vpop.f32.mrb[0].mxu0
        %v733 = vpop.f32.mrb[0].mxu0
        %v734 = vadd.f32 0.0, %v733
        %v735 = vpop.f32.mrb[0].mxu0
        %736 = vdwg.mxu0
        %vm737 = vcmask 23552
        %738 = vst.msk [vmem:[%s199] sm:$0xff] %vm737, %v675
        %739 = vst.msk [vmem:[%s199 + $0x8] sm:$0xff] %vm737, %v678
        %740 = vst.msk [vmem:[%s199 + $0x10] sm:$0xff] %vm737, %v683
        %741 = vst.msk [vmem:[%s199 + $0x18] sm:$0xff] %vm737, %v686
        %742 = vst.msk [vmem:[%s199 + $0x20] sm:$0xff] %vm737, %v691
        %743 = vst.msk [vmem:[%s199 + $0x28] sm:$0xff] %vm737, %v694
        %744 = vst.msk [vmem:[%s199 + $0x30] sm:$0xff] %vm737, %v699
        %745 = vst.msk [vmem:[%s199 + $0x38] sm:$0xff] %vm737, %v702
        %746 = vst.msk [vmem:[%s199 + $0x40] sm:$0xff] %vm737, %v707
        %747 = vst.msk [vmem:[%s199 + $0x48] sm:$0xff] %vm737, %v710
        %748 = vst.msk [vmem:[%s199 + $0x50] sm:$0xff] %vm737, %v715
        %749 = vst.msk [vmem:[%s199 + $0x58] sm:$0xff] %vm737, %v718
        %750 = vst.msk [vmem:[%s199 + $0x60] sm:$0xff] %vm737, %v723
        %751 = vst.msk [vmem:[%s199 + $0x68] sm:$0xff] %vm737, %v726
        %752 = vst.msk [vmem:[%s199 + $0x70] sm:$0xff] %vm737, %v731
        %753 = vst.msk [vmem:[%s199 + $0x78] sm:$0xff] %vm737, %v734
        %s754 = sand.u32 %s112, 1
        %s755 = sand.u32 %s112, 1
        %s756 = smul.addr %s755, 128
        %s757 = scalar_lea.vmem [#allocation2], %s756
        // Predicated region
        $region37: #{tpu_custom_call.1} parent=35 // pred_check
          %p758 = pneg %p122
        $region38: #{tpu_custom_call.1} parent=35 // pred_check_branch
          %760 = sbr.rel (%p758) target = $region40
        $region39: #{tpu_custom_call.1} parent=35 // pred_region
          %s761 = smul.u32 16, %s15
          %s762 = ssub.s32 25, %s761
          %p763 = scmp.lt.s32.totalorder %s762, 16
          %s764 = scalar_select %p763, %s762, 16
          %s765 = smul.u32 128, %s764
          %p766 = scmp.ne.s32.totalorder 0, %s765
          %s767 = smul.addr %s761, 8
          %s768 = scalar_lea.vmem %s4, %s767
          // Predicated region
          $region41: #{tpu_custom_call.1} parent=39 // pred_check
            %p769 = pneg %p766
          $region42: #{tpu_custom_call.1} parent=39 // pred_check_branch
            %771 = sbr.rel (%p769) target = $region44
          $region43: #{tpu_custom_call.1} parent=39 // pred_region
            // Predicated region
            $region45: #{tpu_custom_call.1} parent=43 // pred_check
              _
            $region46: #{tpu_custom_call.1} parent=43 // pred_check_branch
              %773 = sbr.rel (0) target = $region48
            $region47: #{tpu_custom_call.1} parent=43 // pred_region
              // Predicated region
              $region67: #{tpu_custom_call.1} parent=47 // pred_check
                _
              $region68: #{tpu_custom_call.1} parent=47 // pred_check_branch
                %852 = sbr.rel (0) target = $region70
              $region69: #{tpu_custom_call.1} parent=47 // pred_region
                %s853 = sshrl.u32 %s764, 4
                // While loop
                $region71: #{tpu_custom_call.1} parent=69 // loop_pre_header
                  _
                $region72: #{tpu_custom_call.1} parent=69 // loop_header
                  %s855 = sphi 0, %s857
                  %p856 = scmp.ge.s32.totalorder %s855, %s853
                  %s860 = sphi 0, %s897
                  %s861 = sphi %s757, %s900
                  %s862 = sphi %s768, %s901
                $region73: #{tpu_custom_call.1} parent=69 // loop_header_branch
                  %859 = sbr.rel (%p856) target = $region77
                $region74: #{tpu_custom_call.1} parent=69 // loop_body
                  %v863 = vld [vmem:[%s861] sm:$0xff]
                  %864 = vst [vmem:[%s862] sm:$0xff] %v863
                  %v865 = vld [vmem:[%s861 + $0x8] sm:$0xff]
                  %866 = vst [vmem:[%s862 + $0x8] sm:$0xff] %v865
                  %v867 = vld [vmem:[%s861 + $0x10] sm:$0xff]
                  %868 = vst [vmem:[%s862 + $0x10] sm:$0xff] %v867
                  %v869 = vld [vmem:[%s861 + $0x18] sm:$0xff]
                  %870 = vst [vmem:[%s862 + $0x18] sm:$0xff] %v869
                  %v871 = vld [vmem:[%s861 + $0x20] sm:$0xff]
                  %872 = vst [vmem:[%s862 + $0x20] sm:$0xff] %v871
                  %v873 = vld [vmem:[%s861 + $0x28] sm:$0xff]
                  %874 = vst [vmem:[%s862 + $0x28] sm:$0xff] %v873
                  %v875 = vld [vmem:[%s861 + $0x30] sm:$0xff]
                  %876 = vst [vmem:[%s862 + $0x30] sm:$0xff] %v875
                  %v877 = vld [vmem:[%s861 + $0x38] sm:$0xff]
                  %878 = vst [vmem:[%s862 + $0x38] sm:$0xff] %v877
                  %v879 = vld [vmem:[%s861 + $0x40] sm:$0xff]
                  %880 = vst [vmem:[%s862 + $0x40] sm:$0xff] %v879
                  %v881 = vld [vmem:[%s861 + $0x48] sm:$0xff]
                  %882 = vst [vmem:[%s862 + $0x48] sm:$0xff] %v881
                  %v883 = vld [vmem:[%s861 + $0x50] sm:$0xff]
                  %884 = vst [vmem:[%s862 + $0x50] sm:$0xff] %v883
                  %v885 = vld [vmem:[%s861 + $0x58] sm:$0xff]
                  %886 = vst [vmem:[%s862 + $0x58] sm:$0xff] %v885
                  %v887 = vld [vmem:[%s861 + $0x60] sm:$0xff]
                  %888 = vst [vmem:[%s862 + $0x60] sm:$0xff] %v887
                  %v889 = vld [vmem:[%s861 + $0x68] sm:$0xff]
                  %890 = vst [vmem:[%s862 + $0x68] sm:$0xff] %v889
                  %v891 = vld [vmem:[%s861 + $0x70] sm:$0xff]
                  %892 = vst [vmem:[%s862 + $0x70] sm:$0xff] %v891
                  %v893 = vld [vmem:[%s861 + $0x78] sm:$0xff]
                  %894 = vst [vmem:[%s862 + $0x78] sm:$0xff] %v893
                  %s895 = sadd.s32 1, %s860
                  %p896 = scmp.ge.s32.totalorder %s895, %s853
                  %s897 = scalar_select %p896, 0, %s895
                  %s898 = smul.u32 %s897, 128
                  %s899 = smul.u32 %s897, 128
                  %s900 = scalar_lea.vmem %s757, %s898 [#allocation2]
                  %s901 = scalar_lea.vmem %s768, %s899
                $region75: #{tpu_custom_call.1} parent=69 // loop_footer
                  %s857 = sadd.s32 %s855, 1
                $region76: #{tpu_custom_call.1} parent=69 // loop_footer_branch
                  %854 = sbr.rel target = $region72
                $region77: #{tpu_custom_call.1} parent=69 // loop_exit
                  _
                %s902 = sshrl.u32 %s764, 4
                %s903 = sand.u32 %s764, 15
                %s904 = smul.u32 %s902, 16
                %s905 = smul.u32 8, %s904
                %s906 = scalar_lea.vmem %s757, %s905 [#allocation2]
                %s907 = smul.u32 8, %s904
                %s908 = scalar_lea.vmem %s768, %s907
                // While loop
                $region78: #{tpu_custom_call.1} parent=69 // loop_pre_header
                  _
                $region79: #{tpu_custom_call.1} parent=69 // loop_header
                  %s910 = sphi 0, %s912
                  %p911 = scmp.ge.s32.totalorder %s910, %s903
                  %s915 = sphi 0, %s922
                  %s916 = sphi %s906, %s925
                  %s917 = sphi %s908, %s926
                $region80: #{tpu_custom_call.1} parent=69 // loop_header_branch
                  %914 = sbr.rel (%p911) target = $region84
                $region81: #{tpu_custom_call.1} parent=69 // loop_body
                  %v918 = vld [vmem:[%s916] sm:$0xff]
                  %919 = vst [vmem:[%s917] sm:$0xff] %v918
                  %s920 = sadd.s32 1, %s915
                  %p921 = scmp.ge.s32.totalorder %s920, %s903
                  %s922 = scalar_select %p921, 0, %s920
                  %s923 = smul.u32 %s922, 8
                  %s924 = smul.u32 %s922, 8
                  %s925 = scalar_lea.vmem %s906, %s923 [#allocation2]
                  %s926 = scalar_lea.vmem %s908, %s924
                $region82: #{tpu_custom_call.1} parent=69 // loop_footer
                  %s912 = sadd.s32 %s910, 1
                $region83: #{tpu_custom_call.1} parent=69 // loop_footer_branch
                  %909 = sbr.rel target = $region79
                $region84: #{tpu_custom_call.1} parent=69 // loop_exit
                  _
              $region70: #{tpu_custom_call.1} parent=47 // pred_fallthru
                _
              // Predicated region
              $region85: #{tpu_custom_call.1} parent=47 // pred_check
                _
              $region86: #{tpu_custom_call.1} parent=47 // pred_check_branch
                %928 = sbr.rel target = $region88
              $region87: #{tpu_custom_call.1} parent=47 // pred_region
                _
              $region88: #{tpu_custom_call.1} parent=47 // pred_fallthru
                _
            $region48: #{tpu_custom_call.1} parent=43 // pred_fallthru
              _
            // Predicated region
            $region49: #{tpu_custom_call.1} parent=43 // pred_check
              _
            $region50: #{tpu_custom_call.1} parent=43 // pred_check_branch
              %775 = sbr.rel target = $region52
            $region51: #{tpu_custom_call.1} parent=43 // pred_region
              %s777 = sshrl.u32 %s764, 4
              // While loop
              $region53: #{tpu_custom_call.1} parent=51 // loop_pre_header
                _
              $region54: #{tpu_custom_call.1} parent=51 // loop_header
                %s779 = sphi 0, %s781
                %p780 = scmp.ge.s32.totalorder %s779, %s777
                %s784 = sphi 0, %s821
                %s785 = sphi %s757, %s824
                %s786 = sphi %s768, %s825
              $region55: #{tpu_custom_call.1} parent=51 // loop_header_branch
                %783 = sbr.rel (%p780) target = $region59
              $region56: #{tpu_custom_call.1} parent=51 // loop_body
                %v787 = vld [vmem:[%s785] sm:$0xff]
                %788 = vst [vmem:[%s786] sm:$0xff] %v787
                %v789 = vld [vmem:[%s785 + $0x8] sm:$0xff]
                %790 = vst [vmem:[%s786 + $0x8] sm:$0xff] %v789
                %v791 = vld [vmem:[%s785 + $0x10] sm:$0xff]
                %792 = vst [vmem:[%s786 + $0x10] sm:$0xff] %v791
                %v793 = vld [vmem:[%s785 + $0x18] sm:$0xff]
                %794 = vst [vmem:[%s786 + $0x18] sm:$0xff] %v793
                %v795 = vld [vmem:[%s785 + $0x20] sm:$0xff]
                %796 = vst [vmem:[%s786 + $0x20] sm:$0xff] %v795
                %v797 = vld [vmem:[%s785 + $0x28] sm:$0xff]
                %798 = vst [vmem:[%s786 + $0x28] sm:$0xff] %v797
                %v799 = vld [vmem:[%s785 + $0x30] sm:$0xff]
                %800 = vst [vmem:[%s786 + $0x30] sm:$0xff] %v799
                %v801 = vld [vmem:[%s785 + $0x38] sm:$0xff]
                %802 = vst [vmem:[%s786 + $0x38] sm:$0xff] %v801
                %v803 = vld [vmem:[%s785 + $0x40] sm:$0xff]
                %804 = vst [vmem:[%s786 + $0x40] sm:$0xff] %v803
                %v805 = vld [vmem:[%s785 + $0x48] sm:$0xff]
                %806 = vst [vmem:[%s786 + $0x48] sm:$0xff] %v805
                %v807 = vld [vmem:[%s785 + $0x50] sm:$0xff]
                %808 = vst [vmem:[%s786 + $0x50] sm:$0xff] %v807
                %v809 = vld [vmem:[%s785 + $0x58] sm:$0xff]
                %810 = vst [vmem:[%s786 + $0x58] sm:$0xff] %v809
                %v811 = vld [vmem:[%s785 + $0x60] sm:$0xff]
                %812 = vst [vmem:[%s786 + $0x60] sm:$0xff] %v811
                %v813 = vld [vmem:[%s785 + $0x68] sm:$0xff]
                %814 = vst [vmem:[%s786 + $0x68] sm:$0xff] %v813
                %v815 = vld [vmem:[%s785 + $0x70] sm:$0xff]
                %816 = vst [vmem:[%s786 + $0x70] sm:$0xff] %v815
                %v817 = vld [vmem:[%s785 + $0x78] sm:$0xff]
                %818 = vst [vmem:[%s786 + $0x78] sm:$0xff] %v817
                %s819 = sadd.s32 1, %s784
                %p820 = scmp.ge.s32.totalorder %s819, %s777
                %s821 = scalar_select %p820, 0, %s819
                %s822 = smul.u32 %s821, 128
                %s823 = smul.u32 %s821, 128
                %s824 = scalar_lea.vmem %s757, %s822 [#allocation2]
                %s825 = scalar_lea.vmem %s768, %s823
              $region57: #{tpu_custom_call.1} parent=51 // loop_footer
                %s781 = sadd.s32 %s779, 1
              $region58: #{tpu_custom_call.1} parent=51 // loop_footer_branch
                %778 = sbr.rel target = $region54
              $region59: #{tpu_custom_call.1} parent=51 // loop_exit
                _
              %s826 = sshrl.u32 %s764, 4
              %s827 = sand.u32 %s764, 15
              %s828 = smul.u32 %s826, 16
              %s829 = smul.u32 8, %s828
              %s830 = scalar_lea.vmem %s757, %s829 [#allocation2]
              %s831 = smul.u32 8, %s828
              %s832 = scalar_lea.vmem %s768, %s831
              // While loop
              $region60: #{tpu_custom_call.1} parent=51 // loop_pre_header
                _
              $region61: #{tpu_custom_call.1} parent=51 // loop_header
                %s834 = sphi 0, %s836
                %p835 = scmp.ge.s32.totalorder %s834, %s827
                %s839 = sphi 0, %s846
                %s840 = sphi %s830, %s849
                %s841 = sphi %s832, %s850
              $region62: #{tpu_custom_call.1} parent=51 // loop_header_branch
                %838 = sbr.rel (%p835) target = $region66
              $region63: #{tpu_custom_call.1} parent=51 // loop_body
                %v842 = vld [vmem:[%s840] sm:$0xff]
                %843 = vst [vmem:[%s841] sm:$0xff] %v842
                %s844 = sadd.s32 1, %s839
                %p845 = scmp.ge.s32.totalorder %s844, %s827
                %s846 = scalar_select %p845, 0, %s844
                %s847 = smul.u32 %s846, 8
                %s848 = smul.u32 %s846, 8
                %s849 = scalar_lea.vmem %s830, %s847 [#allocation2]
                %s850 = scalar_lea.vmem %s832, %s848
              $region64: #{tpu_custom_call.1} parent=51 // loop_footer
                %s836 = sadd.s32 %s834, 1
              $region65: #{tpu_custom_call.1} parent=51 // loop_footer_branch
                %833 = sbr.rel target = $region61
              $region66: #{tpu_custom_call.1} parent=51 // loop_exit
                _
            $region52: #{tpu_custom_call.1} parent=43 // pred_fallthru
              _
          $region44: #{tpu_custom_call.1} parent=39 // pred_fallthru
            _
          %929 = vnop
        $region40: #{tpu_custom_call.1} parent=35 // pred_fallthru
          _
      $region36: #{tpu_custom_call.1} parent=5 // pred_fallthru
        _
      %p930 = scmp.le.s32.totalorder 2, %s10
      // Predicated region
      $region89: #{tpu_custom_call.1} parent=5 // pred_check
        %p931 = pneg %p930
      $region90: #{tpu_custom_call.1} parent=5 // pred_check_branch
        %933 = sbr.rel (%p931) target = $region92
      $region91: #{tpu_custom_call.1} parent=5 // pred_region
        %s934 = ssub.s32 %s10, 2
        // Predicated region
        $region93: #{tpu_custom_call.1} parent=91 // pred_check
          %p935 = pneg %p128
        $region94: #{tpu_custom_call.1} parent=91 // pred_check_branch
          %937 = sbr.rel (%p935) target = $region96
        $region95: #{tpu_custom_call.1} parent=91 // pred_region
          %s938 = sand.u32 %s113, 1
          %s939 = sand.u32 %s113, 1
          %s940 = smul.addr %s939, 128
          %s941 = scalar_lea.vmem [#allocation2], %s940
        $region96: #{tpu_custom_call.1} parent=91 // pred_fallthru
          _
      $region92: #{tpu_custom_call.1} parent=5 // pred_fallthru
        _
    $region6: #{tpu_custom_call.1} parent=1 // loop_footer
      %s14 = sadd.s32 1, %s10
    $region7: #{tpu_custom_call.1} parent=1 // loop_footer_branch
      %9 = sbr.rel target = $region3
    $region8: #{tpu_custom_call.1} parent=1 // loop_exit
      _

</llo_original>
